<compile_context>
chip_gen: v6e
topology: v6e:2x2x1
jax: 0.10.0
libtpu: 0.0.40
codegen_flags: <defaults>
</compile_context>

<pallas_src>
import functools

import jax
import jax.numpy as jnp
from jax.experimental import pallas as pl
from jax.experimental.pallas import tpu as pltpu


def _dirichlet_kernel(frow_ref, fk_ref, l_ref, out_ref, *, precision):
    k = pl.program_id(2)

    # (tn, tk) @ (tk, Dp) -> (tn, Dp); native-dtype operands, f32 accumulation on the MXU.
    lf = jnp.dot(l_ref[...], fk_ref[...],
                 preferred_element_type=jnp.float32, precision=precision)
    prod = frow_ref[...].astype(jnp.float32) * lf

    @pl.when(k == 0)
    def _():
        out_ref[...] = prod          # fused init: saves one (tn, Dp) f32 store + reload

    @pl.when(k > 0)
    def _():
        out_ref[...] += prod


def _round_up(x, m):
    return ((x + m - 1) // m) * m


def _pick_divisor_tile(n, target, mult):
    """Largest t <= target with n % t == 0 and (t % mult == 0 or t == n); None if none."""
    if n <= target:
        return n
    t = (min(target, n) // mult) * mult
    while t >= mult:
        if n % t == 0:
            return t
        t -= mult
    return None


def _vmem_limit_bytes():
    """Generation-aware scoped-VMEM budget: ~3/4 of physical VMEM, capped at 96 MiB.

    v5e/v6e (128 MiB physical) -> 96 MiB; v7x (64 MiB per TensorCore) -> 48 MiB.
    """
    try:
        cap = pltpu.get_tpu_info().vmem_capacity_bytes
    except Exception:
        cap = 64 * 1024 * 1024        # conservative (v7x-sized) fallback
    return min(96 * 1024 * 1024, (3 * cap) // 4)


def dirichlet_loss(feats, L, *, normalize=False, loss_weight=1.0,
                   cast_l_to_bf16=False, matmul_precision=None):
    assert feats.ndim == 3 and L.ndim == 3
    B, N, D = feats.shape
    assert L.shape == (B, N, N)

    # ---- hoisted pre-passes: cheap O(B*N*D) JAX glue outside the O(B*N^2*D) loop ----
    if normalize:
        # F.normalize(p=2, dim=-1): x / max(||x||, eps) == x * rsqrt(max(||x||^2, eps^2))
        f32 = feats.astype(jnp.float32)
        ss = jnp.sum(f32 * f32, axis=-1, keepdims=True)
        feats = (f32 * jax.lax.rsqrt(jnp.maximum(ss, jnp.float32(1e-24)))).astype(feats.dtype)

    if cast_l_to_bf16 and L.dtype == jnp.float32:
        # Optional bandwidth optimization: L is the dominant HBM stream; halving its width
        # is ~2x wall time when HBM-bound. Off by default (looser numerics vs f32 ref).
        L = L.astype(jnp.bfloat16)

    f_isz = jnp.dtype(feats.dtype).itemsize
    l_isz = jnp.dtype(L.dtype).itemsize
    sub_mult = {4: 8, 2: 16, 1: 32}.get(f_isz, 8)       # dtype-aware sublane multiple

    # Lane-dense accumulator / MXU output: pad D up to a multiple of 128.
    Dp = D if D % 128 == 0 else _round_up(D, 128)

    vmem_limit = _vmem_limit_bytes()
    tile_budget = (7 * vmem_limit) // 10                # leave compiler-scratch headroom

    def working_set(tn_, tk_):
        # double-buffered input tiles + double-buffered resident f32 accumulator block
        return 2 * (tn_ * Dp * f_isz + tk_ * Dp * f_isz + tn_ * tk_ * l_isz + tn_ * Dp * 4)

    # Bias VMEM toward the row tile (tn >= tk): the (tk, Dp) feats tile is re-fetched
    # N/tn times, so growing tn directly cuts redundant feats HBM traffic; L is read once.
    tn_t, tk_t = 1024, 512
    while working_set(tn_t, tk_t) > tile_budget:
        if tk_t > 128:
            tk_t //= 2
        elif tn_t > 128:
            tn_t //= 2
        else:
            break

    tn = _pick_divisor_tile(N, tn_t, sub_mult)
    tk = _pick_divisor_tile(N, tk_t, 128)
    if tn is None or tk is None:
        # No friendly divisor of N: zero-pad N instead of falling back to a (tn, N) L tile
        # that could blow past the VMEM budget. Padded rows/cols contribute exactly zero.
        Np = _round_up(N, 128)
        tk = _pick_divisor_tile(Np, tk_t, 128)
        tn = _pick_divisor_tile(Np, tn_t, sub_mult)
    else:
        Np = N

    if Np != N or Dp != D:
        feats = jnp.pad(feats, ((0, 0), (0, Np - N), (0, Dp - D)))
    if Np != N:
        L = jnp.pad(L, ((0, 0), (0, Np - N), (0, Np - N)))

    nr, nk = Np // tn, Np // tk
    # Safety: make sure the limit covers the actual working set (rarely triggers).
    vmem_limit = max(vmem_limit, working_set(tn, tk) + (4 << 20))

    kernel = functools.partial(_dirichlet_kernel, precision=matmul_precision)

    partials = pl.pallas_call(
        kernel,
        out_shape=jax.ShapeDtypeStruct((B, nr, tn, Dp), jnp.float32),
        grid_spec=pltpu.PrefetchScalarGridSpec(
            num_scalar_prefetch=0,
            grid=(B, nr, nk),
            in_specs=[
                # feats row tile: index constant across k -> fetched once per (b, i)
                pl.BlockSpec((pl.Squeezed(), tn, Dp), lambda b, i, k: (b, i, 0)),
                # feats contraction tile
                pl.BlockSpec((pl.Squeezed(), tk, Dp), lambda b, i, k: (b, k, 0)),
                # Laplacian tile: streamed exactly once
                pl.BlockSpec((pl.Squeezed(), tn, tk), lambda b, i, k: (b, i, k)),
            ],
            # per-(b, row-tile) f32 partial block, resident across the k (reduction) axis
            out_specs=pl.BlockSpec((pl.Squeezed(), pl.Squeezed(), tn, Dp),
                                   lambda b, i, k: (b, i, 0, 0)),
        ),
        compiler_params=pltpu.CompilerParams(
            dimension_semantics=("parallel", "parallel", "arbitrary"),
            vmem_limit_bytes=int(vmem_limit),
        ),
    )(feats, feats, L)

    # mean over (B, D) of de, then scale — padded rows/cols are exact zeros so they
    # do not perturb the sum; divide by the ORIGINAL B*D.
    return (loss_weight * jnp.sum(partials) / jnp.float32(B * D)).astype(jnp.float32)


if __name__ == "__main__":
    key = jax.random.PRNGKey(0)
    kf, kl = jax.random.split(key)

    B, N, D = 2, 16, 32
    feats = jax.random.normal(kf, (B, N, D), dtype=jnp.float32)
    A = jax.random.normal(kl, (B, N, N), dtype=jnp.float32)
    L = 0.5 * (A + jnp.swapaxes(A, 1, 2))          # symmetric Laplacian-ish matrix

    def ref_loss(f, Lm, normalize, w):
        if normalize:
            f = f / jnp.maximum(jnp.linalg.norm(f, axis=-1, keepdims=True), 1e-12)
        de = jnp.sum(f * jnp.einsum("bij,bjd->bid", Lm, f,
                                    precision=jax.lax.Precision.HIGHEST), axis=1)
        return w * jnp.mean(de)

    loss = jax.block_until_ready(dirichlet_loss(feats, L, normalize=False, loss_weight=1.0))
    ref = ref_loss(feats, L, False, 1.0)
    assert jnp.allclose(loss, ref, rtol=1e-3, atol=1e-4), (loss, ref)

    loss_n = jax.block_until_ready(dirichlet_loss(feats, L, normalize=True, loss_weight=0.5))
    ref_n = ref_loss(feats, L, True, 0.5)
    assert jnp.allclose(loss_n, ref_n, rtol=1e-3, atol=1e-4), (loss_n, ref_n)

    print("KERNEL_OK")
</pallas_src>

<mosaic_0001>
module attributes {stable_mosaic.version = 11 : i64} {
  func.func @_dirichlet_kernel(%arg0: i32, %arg1: i32, %arg2: i32, %arg3: memref<1x16x128xf32, #tpu.memory_space<vmem>>, %arg4: memref<1x16x128xf32, #tpu.memory_space<vmem>>, %arg5: memref<1x16x16xf32, #tpu.memory_space<vmem>>, %arg6: memref<1x1x16x128xf32, #tpu.memory_space<vmem>>) attributes {dimension_semantics = [#tpu.dimension_semantics<parallel>, #tpu.dimension_semantics<parallel>, #tpu.dimension_semantics<arbitrary>], iteration_bounds = array<i64: 2, 1, 1>, scalar_prefetch = 0 : i64, scratch_operands = 0 : i64, tpu.core_type = #tpu.core_type<tc>, window_params = [{transform_indices = @transform_0, window_bounds = array<i64: 1, 16, 128>}, {transform_indices = @transform_1, window_bounds = array<i64: 1, 16, 128>}, {transform_indices = @transform_2, window_bounds = array<i64: 1, 16, 16>}, {transform_indices = @transform_3, window_bounds = array<i64: 1, 1, 16, 128>}]} {
    %c0 = arith.constant 0 : index
    %c0_0 = arith.constant 0 : index
    %c0_1 = arith.constant 0 : index
    %0 = vector.load %arg5[%c0, %c0_0, %c0_1] : memref<1x16x16xf32, #tpu.memory_space<vmem>>, vector<1x16x16xf32>
    %1 = vector.shape_cast %0 : vector<1x16x16xf32> to vector<16x16xf32>
    %c0_2 = arith.constant 0 : index
    %c0_3 = arith.constant 0 : index
    %c0_4 = arith.constant 0 : index
    %2 = vector.load %arg4[%c0_2, %c0_3, %c0_4] : memref<1x16x128xf32, #tpu.memory_space<vmem>>, vector<1x16x128xf32>
    %3 = vector.shape_cast %2 : vector<1x16x128xf32> to vector<16x128xf32>
    %cst = arith.constant dense<0.000000e+00> : vector<16x128xf32>
    %4 = tpu.matmul %1, %3, %cst {dimension_numbers = #tpu.dot_dimension_numbers<[1], [0], [0], [1], [0, 0, 1, 1], [], []>} : vector<16x16xf32>, vector<16x128xf32>, vector<16x128xf32> -> vector<16x128xf32>
    %c0_5 = arith.constant 0 : index
    %c0_6 = arith.constant 0 : index
    %c0_7 = arith.constant 0 : index
    %5 = vector.load %arg3[%c0_5, %c0_6, %c0_7] : memref<1x16x128xf32, #tpu.memory_space<vmem>>, vector<1x16x128xf32>
    %6 = vector.shape_cast %5 : vector<1x16x128xf32> to vector<16x128xf32>
    %7 = arith.mulf %6, %4 : vector<16x128xf32>
    %c0_i32 = arith.constant 0 : i32
    %8 = arith.cmpi eq, %arg2, %c0_i32 : i32
    %9 = arith.extui %8 : i1 to i32
    %c0_i32_8 = arith.constant 0 : i32
    %10 = arith.cmpi ne, %9, %c0_i32_8 : i32
    scf.if %10 {
      %c0_11 = arith.constant 0 : index
      %c0_12 = arith.constant 0 : index
      %c0_13 = arith.constant 0 : index
      %c0_14 = arith.constant 0 : index
      %14 = vector.load %arg6[%c0_11, %c0_12, %c0_13, %c0_14] : memref<1x1x16x128xf32, #tpu.memory_space<vmem>>, vector<1x1x16x128xf32>
      %15 = vector.shape_cast %14 : vector<1x1x16x128xf32> to vector<16x128xf32>
      %16 = vector.shape_cast %7 : vector<16x128xf32> to vector<1x1x16x128xf32>
      tpu.vector_store %arg6[%c0_11, %c0_12, %c0_13, %c0_14], %16 {strides = array<i32>} : memref<1x1x16x128xf32, #tpu.memory_space<vmem>>, vector<1x1x16x128xf32>,
    } else {
    }
    %c0_i32_9 = arith.constant 0 : i32
    %11 = arith.cmpi sgt, %arg2, %c0_i32_9 : i32
    %12 = arith.extui %11 : i1 to i32
    %c0_i32_10 = arith.constant 0 : i32
    %13 = arith.cmpi ne, %12, %c0_i32_10 : i32
    scf.if %13 {
      %c0_11 = arith.constant 0 : index
      %c0_12 = arith.constant 0 : index
      %c0_13 = arith.constant 0 : index
      %c0_14 = arith.constant 0 : index
      %14 = vector.load %arg6[%c0_11, %c0_12, %c0_13, %c0_14] : memref<1x1x16x128xf32, #tpu.memory_space<vmem>>, vector<1x1x16x128xf32>
      %15 = vector.shape_cast %14 : vector<1x1x16x128xf32> to vector<16x128xf32>
      %16 = arith.addf %15, %7 : vector<16x128xf32>
      %c0_15 = arith.constant 0 : index
      %c0_16 = arith.constant 0 : index
      %c0_17 = arith.constant 0 : index
      %c0_18 = arith.constant 0 : index
      %17 = vector.load %arg6[%c0_15, %c0_16, %c0_17, %c0_18] : memref<1x1x16x128xf32, #tpu.memory_space<vmem>>, vector<1x1x16x128xf32>
      %18 = vector.shape_cast %17 : vector<1x1x16x128xf32> to vector<16x128xf32>
      %19 = vector.shape_cast %16 : vector<16x128xf32> to vector<1x1x16x128xf32>
      tpu.vector_store %arg6[%c0_15, %c0_16, %c0_17, %c0_18], %19 {strides = array<i32>} : memref<1x1x16x128xf32, #tpu.memory_space<vmem>>, vector<1x1x16x128xf32>,
    } else {
    }
    return
  }
  func.func @transform_0(%arg0: i32, %arg1: i32, %arg2: i32) -> (i32, i32, i32) {
    %c0_i32 = arith.constant 0 : i32
    %c0_i32_0 = arith.constant 0 : i32
    return %arg0, %arg1, %c0_i32 : i32, i32, i32
  }
  func.func @transform_1(%arg0: i32, %arg1: i32, %arg2: i32) -> (i32, i32, i32) {
    %c0_i32 = arith.constant 0 : i32
    %c0_i32_0 = arith.constant 0 : i32
    return %arg0, %arg2, %c0_i32 : i32, i32, i32
  }
  func.func @transform_2(%arg0: i32, %arg1: i32, %arg2: i32) -> (i32, i32, i32) {
    %c0_i32 = arith.constant 0 : i32
    return %arg0, %arg1, %arg2 : i32, i32, i32
  }
  func.func @transform_3(%arg0: i32, %arg1: i32, %arg2: i32) -> (i32, i32, i32, i32) {
    %c0_i32 = arith.constant 0 : i32
    %c0_i32_0 = arith.constant 0 : i32
    %c0_i32_1 = arith.constant 0 : i32
    return %arg0, %arg1, %c0_i32, %c0_i32_0 : i32, i32, i32, i32
  }
}

</mosaic_0001>

<llo_original>
// kernel: tpu_custom_call.1
$region0: #{tpu_custom_call.1}
  #allocation0 [shape = 'u32[]', space=smem, size = 0x4, offset = 0x4, fixed_abs, tag = 'smem constant byte address 0x4 - core index']
  #allocation1 [shape = 'u32[144,128]{1,0:T(1,128)}', space=vmem, size = 0x12000, scoped, tag = 'internal scratch']
  %s0 = inlined_call_operand.hbm [shape: f32[2,16,128], index: 0, kind: input, shape index: {}]
  %s1 = inlined_call_operand.hbm [shape: f32[2,16,128], index: 1, kind: input, shape index: {}]
  %s2 = inlined_call_operand.hbm [shape: f32[2,16,16], index: 2, kind: input, shape index: {}]
  %s3 = inlined_call_operand.hbm [shape: f32[2,1,16,128], index: 3, kind: output, shape index: {}]
  %s4 = sld [smem:[#allocation0]]
  $region65: #{tpu_custom_call.1} parent=0
    _
  %s6 = ssub.s32 1, %s4
  %s7 = scalar_select 0, %s6, %s4
  $region1: #{tpu_custom_call.1} parent=0
    #allocation2 [shape = 'u8[16384]{0}', space=vmem, size = 0x4000, scoped, tag = 'input window, operand 0']
    #allocation3 [shape = 's32[2]{0}', space=sflag, size = 0x8, scoped, tag = 'scoped memory for tpu_custom_call.1']
    #allocation4 [shape = 's32[2]{0}', space=sflag, size = 0x8, scoped, tag = 'scoped memory for tpu_custom_call.1']
    #allocation5 [shape = 'u8[16384]{0}', space=vmem, size = 0x4000, scoped, tag = 'input window, operand 1']
    #allocation6 [shape = 's32[2]{0}', space=sflag, size = 0x8, scoped, tag = 'scoped memory for tpu_custom_call.1']
    #allocation7 [shape = 'u8[16384]{0}', space=vmem, size = 0x4000, scoped, tag = 'input window, operand 2']
    #allocation8 [shape = 'u8[16384]{0}', space=vmem, size = 0x4000, scoped, tag = 'output window, operand 0']
    %8 = vsyncpa [#allocation3], 0
    %s9 = scalar_lea.sflag [#allocation3], 1
    %10 = vsyncpa %s9, 0
    %11 = vsyncpa [#allocation6], 0
    %s12 = scalar_lea.sflag [#allocation6], 1
    %13 = vsyncpa %s12, 0
    %14 = vsyncpa [#allocation4], 0
    %s15 = scalar_lea.sflag [#allocation4], 1
    %16 = vsyncpa %s15, 0
    loop: start=0, step=1, limit=4
    $region2: #{tpu_custom_call.1} parent=1 // loop_pre_header
      _
    $region3: #{tpu_custom_call.1} parent=1 // loop_header
      %s18 = sphi 0, %s22
      %p19 = scmp.ge.s32.totalorder %s18, 4
      %s25 = sphi 0, %s44
      %s26 = sphi 0, %s40
      %s27 = sphi 0, %s36
      %s28 = sphi 0, %s25
      %s29 = sphi 0, %s26
      %s30 = sphi 0, %s27
      %s31 = sphi 0, %s28
      %s32 = sphi 0, %s29
      %s33 = sphi 0, %s30
      %s49 = sphi 0, %s51
      %s52 = sphi 0, %s49
      %s53 = sphi 0, %s52
      %s69 = sphi 0, %s53
      %s77 = sphi 0, %s79
      %s80 = sphi 0, %s77
      %s81 = sphi 0, %s80
      %s97 = sphi 0, %s81
      %s107 = sphi 0, %s109
      %s110 = sphi 0, %s107
      %s111 = sphi 0, %s110
      %s127 = sphi 0, %s111
      %s135 = sphi 0, %s137
      %s138 = sphi 0, %s135
      %s139 = sphi 0, %s138
      %s155 = sphi 0, %s139
    $region4: #{tpu_custom_call.1} parent=1 // loop_header_branch
      %21 = sbr.rel (%p19) target = $region8
    $region5: #{tpu_custom_call.1} parent=1 // loop_body
      %s23 = ssub.s32 %s18, 1
      %s24 = ssub.s32 %s18, 2
      %s34 = sadd.s32 1, %s27
      %p35 = scmp.ge.s32.totalorder %s34, 1
      %s36 = scalar_select %p35, 0, %s34
      %s37 = sadd.s32 1, %s26
      %s38 = scalar_select %p35, %s37, %s26
      %p39 = scmp.ge.s32.totalorder %s38, 1
      %s40 = scalar_select %p39, 0, %s38
      %s41 = sadd.s32 1, %s25
      %s42 = scalar_select %p39, %s41, %s25
      %p43 = scmp.ge.s32.totalorder %s42, 2
      %s44 = scalar_select %p43, 0, %s42
      %s45 = ssub.s32 %s25, %s44
      %s46 = ssub.s32 %s26, %s40
      %s47 = sor.u32 %s45, %s46
      %p48 = scmp.eq.s32.totalorder %s47, 0
      %s50 = sadd.s32 %s49, 1
      %s51 = scalar_select %p48, %s49, %s50
      %p54 = pneg %p48
      %p55 = scmp.eq.s32.totalorder %s18, 1
      %p56 = por %p54, %p55
      %p57 = scmp.ne.s32.totalorder %s49, %s52
      %p58 = scmp.eq.s32.totalorder %s18, 0
      %p59 = por %p57, %p58
      %p60 = scmp.ne.s32.totalorder %s49, %s52
      %p61 = scmp.eq.s32.totalorder %s23, 1
      %p62 = por %p60, %p61
      %p63 = scmp.ne.s32.totalorder %s52, %s53
      %p64 = scmp.eq.s32.totalorder %s23, 0
      %p65 = por %p63, %p64
      %p66 = scmp.ne.s32.totalorder %s52, %s53
      %p67 = scmp.eq.s32.totalorder %s24, 1
      %p68 = por %p66, %p67
      %p70 = scmp.ne.s32.totalorder %s53, %s69
      %p71 = scmp.eq.s32.totalorder %s24, 0
      %p72 = por %p70, %p71
      %s73 = ssub.s32 %s25, %s44
      %s74 = ssub.s32 %s27, %s36
      %s75 = sor.u32 %s73, %s74
      %p76 = scmp.eq.s32.totalorder %s75, 0
      %s78 = sadd.s32 %s77, 1
      %s79 = scalar_select %p76, %s77, %s78
      %p82 = pneg %p76
      %p83 = scmp.eq.s32.totalorder %s18, 1
      %p84 = por %p82, %p83
      %p85 = scmp.ne.s32.totalorder %s77, %s80
      %p86 = scmp.eq.s32.totalorder %s18, 0
      %p87 = por %p85, %p86
      %p88 = scmp.ne.s32.totalorder %s77, %s80
      %p89 = scmp.eq.s32.totalorder %s23, 1
      %p90 = por %p88, %p89
      %p91 = scmp.ne.s32.totalorder %s80, %s81
      %p92 = scmp.eq.s32.totalorder %s23, 0
      %p93 = por %p91, %p92
      %p94 = scmp.ne.s32.totalorder %s80, %s81
      %p95 = scmp.eq.s32.totalorder %s24, 1
      %p96 = por %p94, %p95
      %p98 = scmp.ne.s32.totalorder %s81, %s97
      %p99 = scmp.eq.s32.totalorder %s24, 0
      %p100 = por %p98, %p99
      %s101 = ssub.s32 %s25, %s44
      %s102 = ssub.s32 %s26, %s40
      %s103 = sor.u32 %s101, %s102
      %s104 = ssub.s32 %s27, %s36
      %s105 = sor.u32 %s103, %s104
      %p106 = scmp.eq.s32.totalorder %s105, 0
      %s108 = sadd.s32 %s107, 1
      %s109 = scalar_select %p106, %s107, %s108
      %p112 = pneg %p106
      %p113 = scmp.eq.s32.totalorder %s18, 1
      %p114 = por %p112, %p113
      %p115 = scmp.ne.s32.totalorder %s107, %s110
      %p116 = scmp.eq.s32.totalorder %s18, 0
      %p117 = por %p115, %p116
      %p118 = scmp.ne.s32.totalorder %s107, %s110
      %p119 = scmp.eq.s32.totalorder %s23, 1
      %p120 = por %p118, %p119
      %p121 = scmp.ne.s32.totalorder %s110, %s111
      %p122 = scmp.eq.s32.totalorder %s23, 0
      %p123 = por %p121, %p122
      %p124 = scmp.ne.s32.totalorder %s110, %s111
      %p125 = scmp.eq.s32.totalorder %s24, 1
      %p126 = por %p124, %p125
      %p128 = scmp.ne.s32.totalorder %s111, %s127
      %p129 = scmp.eq.s32.totalorder %s24, 0
      %p130 = por %p128, %p129
      %s131 = ssub.s32 %s25, %s44
      %s132 = ssub.s32 %s26, %s40
      %s133 = sor.u32 %s131, %s132
      %p134 = scmp.eq.s32.totalorder %s133, 0
      %s136 = sadd.s32 %s135, 1
      %s137 = scalar_select %p134, %s135, %s136
      %p140 = pneg %p134
      %p141 = scmp.eq.s32.totalorder %s18, 1
      %p142 = por %p140, %p141
      %p143 = scmp.ne.s32.totalorder %s135, %s138
      %p144 = scmp.eq.s32.totalorder %s18, 0
      %p145 = por %p143, %p144
      %p146 = scmp.ne.s32.totalorder %s135, %s138
      %p147 = scmp.eq.s32.totalorder %s23, 1
      %p148 = por %p146, %p147
      %p149 = scmp.ne.s32.totalorder %s138, %s139
      %p150 = scmp.eq.s32.totalorder %s23, 0
      %p151 = por %p149, %p150
      %p152 = scmp.ne.s32.totalorder %s138, %s139
      %p153 = scmp.eq.s32.totalorder %s24, 1
      %p154 = por %p152, %p153
      %p156 = scmp.ne.s32.totalorder %s139, %s155
      %p157 = scmp.eq.s32.totalorder %s24, 0
      %p158 = por %p156, %p157
      %p159 = scmp.le.s32.totalorder 1, %s18
      %p160 = scmp.lt.s32.totalorder %s18, 3
      %p161 = pnand %p159, %p160
      %p162 = pneg %p161
      // Predicated region
      $region9: #{tpu_custom_call.1} parent=5 // pred_check
        _
      $region10: #{tpu_custom_call.1} parent=5 // pred_check_branch
        %164 = sbr.rel (%p161) target = $region12
      $region11: #{tpu_custom_call.1} parent=5 // pred_region
        %s165 = ssub.s32 %s18, 1
      $region12: #{tpu_custom_call.1} parent=5 // pred_fallthru
        _
      %p166 = scmp.lt.s32.totalorder %s18, 2
      // Predicated region
      $region13: #{tpu_custom_call.1} parent=5 // pred_check
        %p167 = pneg %p166
      $region14: #{tpu_custom_call.1} parent=5 // pred_check_branch
        %169 = sbr.rel (%p167) target = $region16
      $region15: #{tpu_custom_call.1} parent=5 // pred_region
        // Predicated region
        $region17: #{tpu_custom_call.1} parent=15 // pred_check
          %p170 = pneg %p59
        $region18: #{tpu_custom_call.1} parent=15 // pred_check_branch
          %172 = sbr.rel (%p170) target = $region20
        $region19: #{tpu_custom_call.1} parent=15 // pred_region
          %s173 = sand.u32 %s49, 1
          %s174 = scalar_lea.sflag [#allocation3], %s173
          %s175 = sand.u32 %s49, 1
          %s176 = smul.addr %s175, 16
          %s177 = scalar_lea.vmem [#allocation2], %s176
          %s178 = smul.u32 2, %s26
          %s180 = ssub.s32 256, 256
          %181 = vsyncadd %s174, %s180
          %s182 = smul.addr %s25, 2
          %s183 = sadd.s32 %s178, %s182
          %s184 = smul.addr %s183, 128
          %s185 = scalar_lea.hbm %s0, %s184
          %s186 = sshll.u32 %s177, 4
          %s187 = int_to_ptr.vmem [resolvable:$true] %s186
          %192 = dma.hbm_to_vmem [thread:$0]  %s185, 256, %s187, %s174, 128, 128, 8
        $region20: #{tpu_custom_call.1} parent=15 // pred_fallthru
          _
        // Predicated region
        $region21: #{tpu_custom_call.1} parent=15 // pred_check
          %p193 = pneg %p87
        $region22: #{tpu_custom_call.1} parent=15 // pred_check_branch
          %195 = sbr.rel (%p193) target = $region24
        $region23: #{tpu_custom_call.1} parent=15 // pred_region
          %s196 = sand.u32 %s18, 1
          %s197 = scalar_lea.sflag [#allocation6], %s196
          %s198 = sand.u32 %s77, 1
          %s199 = smul.addr %s198, 16
          %s200 = scalar_lea.vmem [#allocation5], %s199
          %s201 = smul.u32 2, %s27
          %s203 = ssub.s32 256, 256
          %204 = vsyncadd %s197, %s203
          %s205 = smul.addr %s25, 2
          %s206 = sadd.s32 %s201, %s205
          %s207 = smul.addr %s206, 128
          %s208 = scalar_lea.hbm %s1, %s207
          %s209 = sshll.u32 %s200, 4
          %s210 = int_to_ptr.vmem [resolvable:$true] %s209
          %215 = dma.hbm_to_vmem [thread:$0]  %s208, 256, %s210, %s197, 128, 128, 8
        $region24: #{tpu_custom_call.1} parent=15 // pred_fallthru
          _
        // Predicated region
        $region25: #{tpu_custom_call.1} parent=15 // pred_check
          %p216 = pneg %p117
        $region26: #{tpu_custom_call.1} parent=15 // pred_check_branch
          %218 = sbr.rel (%p216) target = $region28
        $region27: #{tpu_custom_call.1} parent=15 // pred_region
          %s219 = sand.u32 %s18, 1
          %s220 = scalar_lea.sflag [#allocation6], %s219
          %s221 = sand.u32 %s107, 1
          %s222 = smul.addr %s221, 16
          %s223 = scalar_lea.vmem [#allocation7], %s222
          %s224 = smul.u32 2, %s26
          %s226 = ssub.s32 256, 256
          %227 = vsyncadd %s220, %s226
          %s228 = sadd.s32 %s27, %s224
          %s229 = smul.addr %s25, 2
          %s230 = sadd.s32 %s228, %s229
          %s231 = smul.addr %s230, 128
          %s232 = scalar_lea.hbm %s2, %s231
          %s233 = sshll.u32 %s223, 4
          %s234 = int_to_ptr.vmem [resolvable:$true] %s233
          %239 = dma.hbm_to_vmem [thread:$0]  %s232, 256, %s234, %s220, 128, 128, 8
        $region28: #{tpu_custom_call.1} parent=15 // pred_fallthru
          _
      $region16: #{tpu_custom_call.1} parent=5 // pred_fallthru
        _
      %p240 = scmp.le.s32.totalorder 1, %s18
      %p241 = scmp.lt.s32.totalorder %s18, 3
      %p242 = pnand %p240, %p241
      %p243 = pneg %p242
      // Predicated region
      $region29: #{tpu_custom_call.1} parent=5 // pred_check
        _
      $region30: #{tpu_custom_call.1} parent=5 // pred_check_branch
        %245 = sbr.rel (%p242) target = $region32
      $region31: #{tpu_custom_call.1} parent=5 // pred_region
        %s246 = ssub.s32 %s18, 1
        %s247 = sand.u32 %s52, 1
        %s248 = scalar_lea.sflag [#allocation3], %s247
        %s249 = sand.u32 %s52, 1
        %s250 = smul.addr %s249, 16
        %s251 = scalar_lea.vmem [#allocation2], %s250
        // Predicated region
        $region33: #{tpu_custom_call.1} parent=31 // pred_check
          %p252 = pneg %p65
        $region34: #{tpu_custom_call.1} parent=31 // pred_check_branch
          %254 = sbr.rel (%p252) target = $region36
        $region35: #{tpu_custom_call.1} parent=31 // pred_region
          %255 = dma.done %s248, 256
        $region36: #{tpu_custom_call.1} parent=31 // pred_fallthru
          _
        %s256 = sand.u32 %s23, 1
        %s257 = scalar_lea.sflag [#allocation6], %s256
        %s258 = sand.u32 %s80, 1
        %s259 = smul.addr %s258, 16
        %s260 = scalar_lea.vmem [#allocation5], %s259
        // Predicated region
        $region37: #{tpu_custom_call.1} parent=31 // pred_check
          %p261 = pneg %p93
        $region38: #{tpu_custom_call.1} parent=31 // pred_check_branch
          %263 = sbr.rel (%p261) target = $region40
        $region39: #{tpu_custom_call.1} parent=31 // pred_region
          %264 = dma.done %s257, 256
        $region40: #{tpu_custom_call.1} parent=31 // pred_fallthru
          _
        %s265 = sand.u32 %s23, 1
        %s266 = scalar_lea.sflag [#allocation6], %s265
        %s267 = sand.u32 %s110, 1
        %s268 = smul.addr %s267, 16
        %s269 = scalar_lea.vmem [#allocation7], %s268
        // Predicated region
        $region41: #{tpu_custom_call.1} parent=31 // pred_check
          %p270 = pneg %p123
        $region42: #{tpu_custom_call.1} parent=31 // pred_check_branch
          %272 = sbr.rel (%p270) target = $region44
        $region43: #{tpu_custom_call.1} parent=31 // pred_region
          %273 = dma.done %s266, 256
        $region44: #{tpu_custom_call.1} parent=31 // pred_fallthru
          _
        %s274 = sand.u32 %s52, 1
        %s275 = scalar_lea.sflag [#allocation3], %s274
        %s276 = sand.u32 %s52, 1
        %s277 = smul.addr %s276, 16
        %s278 = scalar_lea.vmem [#allocation2], %s277
        %p279 = pneg %p65
        %p280 = pneg %p62
        %s281 = sand.u32 %s23, 1
        %s282 = scalar_lea.sflag [#allocation6], %s281
        %s283 = sand.u32 %s80, 1
        %s284 = smul.addr %s283, 16
        %s285 = scalar_lea.vmem [#allocation5], %s284
        %p286 = pneg %p93
        %p287 = pneg %p90
        %s288 = sand.u32 %s23, 1
        %s289 = scalar_lea.sflag [#allocation6], %s288
        %s290 = sand.u32 %s110, 1
        %s291 = smul.addr %s290, 16
        %s292 = scalar_lea.vmem [#allocation7], %s291
        %p293 = pneg %p123
        %p294 = pneg %p120
        %p295 = pneg %p151
        %p296 = pneg %p148
        %s297 = sand.u32 %s138, 1
        %s298 = scalar_lea.sflag [#allocation4], %s297
        %s299 = sand.u32 %s138, 1
        %s300 = smul.addr %s299, 16
        %s301 = scalar_lea.vmem [#allocation8], %s300
        %s302 = smul.u32 2, %s29
        %s303 = smul.u32 2, %s30
        %s304 = smul.u32 2, %s29
        %v305 = vld [vmem:[%s269] sm:$0xff]
        %v306 = vld [vmem:[%s269 + $0x8] sm:$0xff]
        %v307 = vld [vmem:[%s260] sm:$0xff]
        %v308 = vld [vmem:[%s260 + $0x8] sm:$0xff]
        %vm309 = vcmask 130048
        %v311 = vsel %vm309, %v305, 0
        %v314 = vsel %vm309, %v306, 0
        %316 = vmatprep.subr.mxu0 0.0
        %317 = vmatpush1.msra.mxu0 0.0
        %318 = vmatprep.subr.mxu0 0.0
        %319 = vmatpush1.msra.mxu0 0.0
        %320 = vmatprep.subr.mxu0 0.0
        %321 = vmatpush1.msra.mxu0 0.0
        %322 = vmatprep.subr.mxu0 0.0
        %323 = vmatpush1.msra.mxu0 0.0
        %324 = vmatprep.subr.mxu0 0.0
        %325 = vmatpush1.msra.mxu0 0.0
        %326 = vmatprep.subr.mxu0 0.0
        %327 = vmatpush1.msra.mxu0 0.0
        %328 = vmatprep.subr.mxu0 0.0
        %329 = vmatpush1.msra.mxu0 0.0
        %330 = vmatprep.subr.mxu0 0.0
        %331 = vmatpush1.msra.mxu0 0.0
        %332 = vmatprep.subr.mxu0 0.0
        %333 = vmatpush1.msra.mxu0 0.0
        %334 = vmatprep.subr.mxu0 0.0
        %335 = vmatpush1.msra.mxu0 0.0
        %336 = vmatprep.subr.mxu0 0.0
        %337 = vmatpush1.msra.mxu0 0.0
        %338 = vmatprep.subr.mxu0 0.0
        %339 = vmatpush1.msra.mxu0 0.0
        %340 = vmatprep.subr.mxu0 0.0
        %341 = vmatpush1.msra.mxu0 0.0
        %342 = vmatprep.subr.mxu0 0.0
        %343 = vmatpush1.msra.mxu0 0.0
        %344 = vmatprep.subr.mxu0 0.0
        %345 = vmatpush1.msra.mxu0 %v308
        %346 = vmatprep.subr.mxu0 0.0
        %347 = vmatpush1.msra.mxu0 %v307
        %348 = vmatprep.subr.mxu0 0.0
        %349 = vmatpush2.msra.mxu0 0.0
        %350 = vmatprep.subr.mxu0 0.0
        %351 = vmatpush2.msra.mxu0 0.0
        %352 = vmatprep.subr.mxu0 0.0
        %353 = vmatpush2.msra.mxu0 0.0
        %354 = vmatprep.subr.mxu0 0.0
        %355 = vmatpush2.msra.mxu0 0.0
        %356 = vmatprep.subr.mxu0 0.0
        %357 = vmatpush2.msra.mxu0 0.0
        %358 = vmatprep.subr.mxu0 0.0
        %359 = vmatpush2.msra.mxu0 0.0
        %360 = vmatprep.subr.mxu0 0.0
        %361 = vmatpush2.msra.mxu0 0.0
        %362 = vmatprep.subr.mxu0 0.0
        %363 = vmatpush2.msra.mxu0 0.0
        %364 = vmatprep.subr.mxu0 0.0
        %365 = vmatpush2.msra.mxu0 0.0
        %366 = vmatprep.subr.mxu0 0.0
        %367 = vmatpush2.msra.mxu0 0.0
        %368 = vmatprep.subr.mxu0 0.0
        %369 = vmatpush2.msra.mxu0 0.0
        %370 = vmatprep.subr.mxu0 0.0
        %371 = vmatpush2.msra.mxu0 0.0
        %372 = vmatprep.subr.mxu0 0.0
        %373 = vmatpush2.msra.mxu0 0.0
        %374 = vmatprep.subr.mxu0 0.0
        %375 = vmatpush2.msra.mxu0 0.0
        %376 = vmatprep.subr.mxu0 0.0
        %377 = vmatpush2.msra.mxu0 0.0
        %378 = vmatprep.subr.mxu0 0.0
        %379 = vmatpush2.msra.mxu0 0.0
        %380 = vmatprep.mubr.f32.mxu0 0.0
        %381 = vmatmul.mubr.f32.gmra.mxu0 %v311
        %v382 = vpop.f32.mrf.mxu0
        %v383 = vadd.f32 0.0, %v382
        %v384 = vpop.f32.mrf.mxu0
        %385 = vmatprep.mubr.f32.mxu0 0.0
        %386 = vmatmul.mubr.f32.gmra.mxu0 %v314
        %v387 = vpop.f32.mrf.mxu0
        %v388 = vadd.f32 0.0, %v387
        %v389 = vpop.f32.mrf.mxu0
        %390 = vdwg.mxu0
        %v391 = vld [vmem:[%s251] sm:$0xff]
        %v392 = vld [vmem:[%s251 + $0x8] sm:$0xff]
        %v393 = vmul.f32 %v391, %v383
        %v394 = vmul.f32 %v392, %v388
        %p395 = scmp.eq.s32.totalorder %s30, 0
        // Predicated region
        $region45: #{tpu_custom_call.1} parent=31 // pred_check
          %p396 = pneg %p395
        $region46: #{tpu_custom_call.1} parent=31 // pred_check_branch
          %398 = sbr.rel (%p396) target = $region48
        $region47: #{tpu_custom_call.1} parent=31 // pred_region
          %399 = vst [vmem:[%s301] sm:$0xff] %v393
          %400 = vst [vmem:[%s301 + $0x8] sm:$0xff] %v394
        $region48: #{tpu_custom_call.1} parent=31 // pred_fallthru
          _
        %p401 = scmp.gt.s32.totalorder %s30, 0
        // Predicated region
        $region49: #{tpu_custom_call.1} parent=31 // pred_check
          %p402 = pneg %p401
        $region50: #{tpu_custom_call.1} parent=31 // pred_check_branch
          %404 = sbr.rel (%p402) target = $region52
        $region51: #{tpu_custom_call.1} parent=31 // pred_region
          %v405 = vld [vmem:[%s301] sm:$0xff]
          %v406 = vld [vmem:[%s301 + $0x8] sm:$0xff]
          %v407 = vadd.f32 %v405, %v393
          %v408 = vadd.f32 %v406, %v394
          %409 = vst [vmem:[%s301] sm:$0xff] %v407
          %410 = vst [vmem:[%s301 + $0x8] sm:$0xff] %v408
        $region52: #{tpu_custom_call.1} parent=31 // pred_fallthru
          _
        %s411 = sand.u32 %s138, 1
        %s412 = scalar_lea.sflag [#allocation4], %s411
        %s413 = sand.u32 %s138, 1
        %s414 = smul.addr %s413, 16
        %s415 = scalar_lea.vmem [#allocation8], %s414
        // Predicated region
        $region53: #{tpu_custom_call.1} parent=31 // pred_check
          %p416 = pneg %p148
        $region54: #{tpu_custom_call.1} parent=31 // pred_check_branch
          %418 = sbr.rel (%p416) target = $region56
        $region55: #{tpu_custom_call.1} parent=31 // pred_region
          %s420 = ssub.s32 256, 256
          %421 = vsyncadd %s412, %s420
          %s422 = smul.addr %s29, 2
          %s423 = smul.addr %s28, 2
          %s424 = sadd.s32 %s422, %s423
          %s425 = smul.addr %s424, 128
          %s426 = scalar_lea.hbm %s3, %s425
          %s427 = sshll.u32 %s415, 4
          %s428 = int_to_ptr.vmem [resolvable:$true] %s427
          %433 = dma.vmem_to_hbm [thread:$0]  %s428, 256, %s426, %s412, 128, 128, 8
        $region56: #{tpu_custom_call.1} parent=31 // pred_fallthru
          _
      $region32: #{tpu_custom_call.1} parent=5 // pred_fallthru
        _
      %p434 = scmp.le.s32.totalorder 2, %s18
      // Predicated region
      $region57: #{tpu_custom_call.1} parent=5 // pred_check
        %p435 = pneg %p434
      $region58: #{tpu_custom_call.1} parent=5 // pred_check_branch
        %437 = sbr.rel (%p435) target = $region60
      $region59: #{tpu_custom_call.1} parent=5 // pred_region
        %s438 = ssub.s32 %s18, 2
        // Predicated region
        $region61: #{tpu_custom_call.1} parent=59 // pred_check
          %p439 = pneg %p154
        $region62: #{tpu_custom_call.1} parent=59 // pred_check_branch
          %441 = sbr.rel (%p439) target = $region64
        $region63: #{tpu_custom_call.1} parent=59 // pred_region
          %s442 = sand.u32 %s139, 1
          %s443 = scalar_lea.sflag [#allocation4], %s442
          %s444 = sand.u32 %s139, 1
          %s445 = smul.addr %s444, 16
          %s446 = scalar_lea.vmem [#allocation8], %s445
          %447 = dma.done %s443, 256
        $region64: #{tpu_custom_call.1} parent=59 // pred_fallthru
          _
      $region60: #{tpu_custom_call.1} parent=5 // pred_fallthru
        _
    $region6: #{tpu_custom_call.1} parent=1 // loop_footer
      %s22 = sadd.s32 1, %s18
    $region7: #{tpu_custom_call.1} parent=1 // loop_footer_branch
      %17 = sbr.rel target = $region3
    $region8: #{tpu_custom_call.1} parent=1 // loop_exit
      _
    %448 = vsyncpa [#allocation3], 1
    %s449 = scalar_lea.sflag [#allocation3], 1
    %450 = vsyncpa %s449, 1
    %451 = vsyncpa [#allocation6], 1
    %s452 = scalar_lea.sflag [#allocation6], 1
    %453 = vsyncpa %s452, 1
    %454 = vsyncpa [#allocation4], 1
    %s455 = scalar_lea.sflag [#allocation4], 1
    %456 = vsyncpa %s455, 1

</llo_original>
